<compile_context>
chip_gen: v7x
topology: tpu7x:2x2x1
jax: 0.10.0
libtpu: 0.0.40
codegen_flags: <defaults>
</compile_context>

<pallas_src>
import functools

import jax
import jax.numpy as jnp
from jax import lax
from jax.experimental import pallas as pl
from jax.experimental.pallas import tpu as pltpu


# --------------------------------------------------------------------------- #
# Kernel
# --------------------------------------------------------------------------- #
def _self_attention_kernel(xt_ref, xres_ref, g_ref, d_ref, v_ref, gamma_ref,
                           out_ref, attn_ref,
                           *, compute_dtype, exp_dtype, approx_recip):
    """One (batch, key-pixel-tile) grid step: streaming softmax + two matmuls.

    Blocks (channels-first, N = H*W pixels, TJ = key tile):
      xt_ref   : (1, TJ, C) compute_dtype  key-tile pixels, channels-last
      xres_ref : (1, C, TJ) f32            same tile, channels-first (residual)
      g_ref    : (1, C, N)  compute_dtype  G = (Wk^T Wq) X        (resident)
      d_ref    : (1, 1, N)  f32            d_i = (Wq^T bk) . x_i
      v_ref    : (1, C, N)  compute_dtype  V = Wv X + bv          (resident)
      gamma_ref: (1,)       f32 (SMEM)
      out_ref  : (1, C, TJ)
      attn_ref : (1, TJ, N)                attn[jj, i] == attention_map[b, jj, i]
    """
    # Scores directly in the transposed orientation as a plain (M,K)@(K,N)
    # matmul (no hidden XLU transpose):  s_t[jj, i] = <x_jj, G[:, i]> + d[i].
    s_t = lax.dot_general(xt_ref[0], g_ref[0],
                          (((1,), (0,)), ((), ())),
                          preferred_element_type=jnp.float32)       # (TJ, N) f32
    s_t = s_t + d_ref[0]

    # torch Softmax(dim=-2) over the query axis == last (lane) axis here.
    # Max/sum accumulate in f32; exp/scale run in exp_dtype (bf16 on v6e/v7x).
    s_max = jnp.max(s_t, axis=-1, keepdims=True)
    e = jnp.exp((s_t - s_max).astype(exp_dtype))
    denom = jnp.sum(e, axis=-1, keepdims=True, dtype=jnp.float32)
    inv = pl.reciprocal(denom, approx=approx_recip).astype(exp_dtype)
    p = (e * inv).astype(compute_dtype)       # cast once; reused below

    # attention_map[b, jj, i] is exactly p — lane-dense in N, no NxN transpose.
    attn_ref[0] = p.astype(attn_ref.dtype)

    # o[c, jj] = sum_i V[c, i] * p[jj, i]  (contract-last-of-both, MXU-native).
    o = lax.dot_general(v_ref[0], p,
                        (((1,), (1,)), ((), ())),
                        preferred_element_type=jnp.float32)         # (C, TJ) f32

    out_ref[0] = (xres_ref[0] + gamma_ref[0] * o).astype(out_ref.dtype)


# --------------------------------------------------------------------------- #
# Chip-aware sizing helpers
# --------------------------------------------------------------------------- #
def _vmem_capacity_bytes():
    try:
        return int(pltpu.get_tpu_info().vmem_capacity_bytes)
    except Exception:
        return 64 * 1024 * 1024          # conservative fallback (v7x-sized)


def _device_kind():
    try:
        return jax.devices()[0].device_kind.lower()
    except Exception:
        return ""


def _elementwise_softmax_dtype(compute_dtype):
    """bf16 VPU/EUP exists on v6e/v7x; keep f32 elementwise math elsewhere."""
    if jnp.dtype(compute_dtype) != jnp.dtype(jnp.bfloat16):
        return jnp.float32
    kind = _device_kind()
    if ("v6" in kind) or ("v7" in kind) or ("7x" in kind):
        return jnp.bfloat16
    return jnp.float32


def _vmem_limit_bytes(cap):
    # ~96 MiB on 128-MiB parts (v5e/v6e); ~40 MiB on 64-MiB v7x.
    return max(32 * 2**20, min(96 * 2**20, cap - 24 * 2**20))


def _tile_footprint_bytes(tj, n, c, attn_bytes, comp_bytes):
    """Double-buffered blocks + working-set VMEM model for one grid step."""
    c_lane = pl.cdiv(c, 128) * 128       # lane padding where C is the minor dim
    c_sub = pl.cdiv(c, 8) * 8
    fp = 2 * tj * n * attn_bytes         # attention-map output tile
    fp += 2 * c_sub * tj * 4             # out tile (f32)
    fp += 2 * tj * c_lane * comp_bytes   # xt key tile
    fp += 2 * c_sub * tj * 4             # residual x tile (f32)
    fp += 2 * 2 * c_sub * n * comp_bytes # G + V resident blocks
    fp += 2 * 8 * n * 4                  # d row
    fp += 3 * tj * n * 4                 # s_t / exp / p working slabs
    return fp


def _pick_key_tile(n, c, attn_bytes, comp_bytes, budget, cap):
    if _tile_footprint_bytes(n, n, c, attn_bytes, comp_bytes) <= budget:
        return n                          # whole key axis in one tile
    big_vmem = cap >= 96 * 2**20
    max_tj = 1024 if big_vmem else (256 if n >= 4096 else 512)
    for tj in (1024, 512, 256, 128):
        if (tj <= max_tj and tj <= n and
                _tile_footprint_bytes(tj, n, c, attn_bytes, comp_bytes) <= budget):
            return tj
    return 128


# --------------------------------------------------------------------------- #
# Wrapper
# --------------------------------------------------------------------------- #
@functools.partial(jax.jit,
                   static_argnames=("compute_dtype", "attn_dtype", "key_tile"))
def self_attention_forward(x_nchw, wq, bq, wk, bk, wv, bv, gamma, *,
                           compute_dtype=jnp.bfloat16, attn_dtype=None,
                           key_tile=None):
    """x_nchw: (B, C, H, W).  Returns (out (B,C,H,W), attention_map (B,N,N)).

    `bq` is accepted for API parity but is mathematically irrelevant: it only
    adds per-key constants to the scores, which the softmax over the query
    axis removes exactly.  attention_map is returned in `attn_dtype`
    (default = compute_dtype, i.e. bf16 in the production path).
    `key_tile` (multiple of 128) overrides the chip-aware tile choice.
    """
    del bq
    B, C, H, W = x_nchw.shape
    N = H * W

    cdtype = jnp.dtype(compute_dtype)
    adtype = jnp.dtype(compute_dtype if attn_dtype is None else attn_dtype)
    exp_dtype = _elementwise_softmax_dtype(cdtype)
    hi = lax.Precision.HIGHEST           # precompute is tiny; keep it exact

    x_cf = x_nchw.reshape(B, C, N)       # pure reshape, no transpose

    # Fold the query/key 1x1 convs (and the key bias) into one (C+1, C)
    # operator applied to X in the wrapper:
    #   rows 0..C-1 : M^T = Wk^T Wq   -> G     (s_eff[i,j] = x_i^T M x_j + d_i)
    #   row  C      : (Wq^T bk)^T     -> d
    mt_aug = jnp.concatenate(
        [jnp.dot(wk.T, wq, precision=hi),
         jnp.dot(wq.T, bk, precision=hi)[None, :]], axis=0)          # (C+1, C)
    gd = jnp.einsum('oc,bcn->bon', mt_aug, x_cf, precision=hi)       # (B,C+1,N)
    g = gd[:, :C].astype(cdtype)                                     # (B, C, N)
    d = gd[:, C:]                                                    # (B, 1, N) f32
    v = (jnp.einsum('oc,bcn->bon', wv, x_cf, precision=hi)
         + bv[None, :, None]).astype(cdtype)                         # (B, C, N)
    xt = jnp.transpose(x_cf, (0, 2, 1)).astype(cdtype)               # (B, N, C)

    cap = _vmem_capacity_bytes()
    vmem_limit = _vmem_limit_bytes(cap)
    if key_tile is None:
        tj = _pick_key_tile(N, C, adtype.itemsize, cdtype.itemsize,
                            vmem_limit - 6 * 2**20, cap)
    else:
        tj = int(key_tile)

    # Pad the *key* axis up to a tile multiple.  The softmax runs over the
    # query axis (never padded), so padded rows only produce junk attn rows /
    # out columns that are sliced off below — no masking needed.
    n_pad = pl.cdiv(N, tj) * tj
    x_res = x_cf
    if n_pad != N:
        xt = jnp.pad(xt, ((0, 0), (0, n_pad - N), (0, 0)))
        x_res = jnp.pad(x_cf, ((0, 0), (0, 0), (0, n_pad - N)))
    nj = n_pad // tj

    kernel = functools.partial(
        _self_attention_kernel,
        compute_dtype=cdtype,
        exp_dtype=exp_dtype,
        approx_recip=(cdtype != jnp.dtype(jnp.float32)),
    )

    out_cf, attn = pl.pallas_call(
        kernel,
        out_shape=(
            jax.ShapeDtypeStruct((B, C, n_pad), x_nchw.dtype),
            jax.ShapeDtypeStruct((B, n_pad, N), adtype),
        ),
        grid_spec=pltpu.PrefetchScalarGridSpec(
            num_scalar_prefetch=0,
            grid=(B, nj),
            in_specs=[
                pl.BlockSpec((1, tj, C), lambda b, j: (b, j, 0)),   # xt key tile
                pl.BlockSpec((1, C, tj), lambda b, j: (b, 0, j)),   # residual x
                pl.BlockSpec((1, C, N), lambda b, j: (b, 0, 0)),    # G (resident)
                pl.BlockSpec((1, 1, N), lambda b, j: (b, 0, 0)),    # d row
                pl.BlockSpec((1, C, N), lambda b, j: (b, 0, 0)),    # V (resident)
                pl.BlockSpec(memory_space=pltpu.SMEM),              # gamma scalar
            ],
            out_specs=[
                pl.BlockSpec((1, C, tj), lambda b, j: (b, 0, j)),
                pl.BlockSpec((1, tj, N), lambda b, j: (b, j, 0)),
            ],
        ),
        compiler_params=pltpu.CompilerParams(
            # No scratch carry (projections hoisted to the wrapper), so both
            # axes are parallel — keeps both v7x TensorCores busy even at B=1.
            dimension_semantics=("parallel", "parallel"),
            vmem_limit_bytes=vmem_limit,
        ),
    )(xt, x_res, g, d, v, gamma)

    if n_pad != N:
        out_cf = out_cf[:, :, :N]
        attn = attn[:, :N, :]
    return out_cf.reshape(B, C, H, W), attn


# --------------------------------------------------------------------------- #
# Pure-JAX reference (mirrors the PyTorch module exactly)
# --------------------------------------------------------------------------- #
def reference_forward(x_nchw, wq, bq, wk, bk, wv, bv, gamma):
    B, C, H, W = x_nchw.shape
    N = H * W
    xf = x_nchw.reshape(B, C, N)                                   # (B, C, N)
    q = jnp.einsum('oc,bcn->bon', wq, xf) + bq[None, :, None]      # (B, Cq, N)
    k = jnp.einsum('oc,bcn->bon', wk, xf) + bk[None, :, None]      # (B, Cq, N)
    v = jnp.einsum('oc,bcn->bon', wv, xf) + bv[None, :, None]      # (B, C, N)
    proj_query = jnp.transpose(q, (0, 2, 1))                       # (B, N, Cq)
    s = jnp.einsum('bic,bcj->bij', proj_query, k)                  # (B, N, N)
    attention_map_T = jax.nn.softmax(s, axis=-2)
    attention_map = jnp.transpose(attention_map_T, (0, 2, 1))
    o = jnp.einsum('bcn,bnj->bcj', v, attention_map_T)             # (B, C, N)
    o = o.reshape(B, C, H, W)
    out = x_nchw + gamma[0] * o
    return out, attention_map


if __name__ == "__main__":
    B, C = 2, 64                       # in_dim=64 -> query/key channels = 8
    Cq = C // 8

    key = jax.random.PRNGKey(0)
    kx, kx2, kq, kk, kv, kbq, kbk, kbv = jax.random.split(key, 8)

    wq = 0.05 * jax.random.normal(kq, (Cq, C), jnp.float32)
    wk = 0.05 * jax.random.normal(kk, (Cq, C), jnp.float32)
    wv = 0.05 * jax.random.normal(kv, (C, C), jnp.float32)
    bq = 0.01 * jax.random.normal(kbq, (Cq,), jnp.float32)
    bk = 0.01 * jax.random.normal(kbk, (Cq,), jnp.float32)
    bv = 0.01 * jax.random.normal(kbv, (C,), jnp.float32)
    # nn.Parameter(torch.zeros(1)) in the module; nonzero here so the attention
    # path actually contributes to the output being checked.
    gamma = jnp.array([0.5], jnp.float32)

    # --- case 1/2: 8x8 feature map (N=64), whole key axis in one tile --------
    x = jax.random.normal(kx, (B, C, 8, 8), jnp.float32)
    out_exp, attn_exp = reference_forward(x, wq, bq, wk, bk, wv, bv, gamma)

    # f32 path: tight check against the exact reference.
    out32, attn32 = self_attention_forward(
        x, wq, bq, wk, bk, wv, bv, gamma, compute_dtype=jnp.float32)
    jax.block_until_ready((out32, attn32))
    assert out32.shape == (B, C, 8, 8) and attn32.shape == (B, 64, 64)
    assert jnp.allclose(out32, out_exp, atol=2e-4, rtol=2e-4)
    assert jnp.allclose(attn32, attn_exp, atol=2e-5, rtol=1e-3)

    # bf16-operand / f32-accumulate path (production default): bf16-level tol.
    out16, attn16 = self_attention_forward(
        x, wq, bq, wk, bk, wv, bv, gamma, compute_dtype=jnp.bfloat16)
    jax.block_until_ready((out16, attn16))
    assert attn16.dtype == jnp.bfloat16        # halved N^2 HBM writeback
    assert out16.shape == (B, C, 8, 8) and attn16.shape == (B, 64, 64)
    assert jnp.allclose(out16, out_exp, atol=2e-2, rtol=2e-2)
    assert jnp.allclose(attn16.astype(jnp.float32), attn_exp, atol=5e-3, rtol=5e-2)

    # --- case 3: 12x12 feature map (N=144), forced key tile of 128 -----------
    # Exercises the tiled + key-axis-padded path (N padded to 256, grid (B,2)).
    x2 = jax.random.normal(kx2, (B, C, 12, 12), jnp.float32)
    out2_exp, attn2_exp = reference_forward(x2, wq, bq, wk, bk, wv, bv, gamma)
    out2, attn2 = self_attention_forward(
        x2, wq, bq, wk, bk, wv, bv, gamma,
        compute_dtype=jnp.bfloat16, key_tile=128)
    jax.block_until_ready((out2, attn2))
    assert out2.shape == (B, C, 12, 12) and attn2.shape == (B, 144, 144)
    assert jnp.allclose(out2, out2_exp, atol=2e-2, rtol=2e-2)
    assert jnp.allclose(attn2.astype(jnp.float32), attn2_exp, atol=5e-3, rtol=5e-2)

    print("KERNEL_OK")
</pallas_src>

<mosaic_0001>
module attributes {stable_mosaic.version = 11 : i64} {
  func.func @_self_attention_kernel(%arg0: i32, %arg1: i32, %arg2: memref<1x64x64xf32, #tpu.memory_space<vmem>>, %arg3: memref<1x64x64xf32, #tpu.memory_space<vmem>>, %arg4: memref<1x64x64xf32, #tpu.memory_space<vmem>>, %arg5: memref<1x1x64xf32, #tpu.memory_space<vmem>>, %arg6: memref<1x64x64xf32, #tpu.memory_space<vmem>>, %arg7: memref<1xf32, #tpu.memory_space<smem>>, %arg8: memref<1x64x64xf32, #tpu.memory_space<vmem>>, %arg9: memref<1x64x64xf32, #tpu.memory_space<vmem>>) attributes {dimension_semantics = [#tpu.dimension_semantics<parallel>, #tpu.dimension_semantics<parallel>], iteration_bounds = array<i64: 2, 1>, scalar_prefetch = 0 : i64, scratch_operands = 0 : i64, tpu.core_type = #tpu.core_type<tc>, window_params = [{transform_indices = @transform_0, window_bounds = array<i64: 1, 64, 64>}, {transform_indices = @transform_1, window_bounds = array<i64: 1, 64, 64>}, {transform_indices = @transform_2, window_bounds = array<i64: 1, 64, 64>}, {transform_indices = @transform_3, window_bounds = array<i64: 1, 1, 64>}, {transform_indices = @transform_4, window_bounds = array<i64: 1, 64, 64>}, {transform_indices = @transform_5, window_bounds = array<i64: 1>}, {transform_indices = @transform_6, window_bounds = array<i64: 1, 64, 64>}, {transform_indices = @transform_7, window_bounds = array<i64: 1, 64, 64>}]} {
    %c0 = arith.constant 0 : index
    %c0_0 = arith.constant 0 : index
    %c0_1 = arith.constant 0 : index
    %0 = vector.load %arg2[%c0, %c0_0, %c0_1] : memref<1x64x64xf32, #tpu.memory_space<vmem>>, vector<1x64x64xf32>
    %1 = vector.shape_cast %0 : vector<1x64x64xf32> to vector<64x64xf32>
    %c0_2 = arith.constant 0 : index
    %c0_3 = arith.constant 0 : index
    %c0_4 = arith.constant 0 : index
    %2 = vector.load %arg4[%c0_2, %c0_3, %c0_4] : memref<1x64x64xf32, #tpu.memory_space<vmem>>, vector<1x64x64xf32>
    %3 = vector.shape_cast %2 : vector<1x64x64xf32> to vector<64x64xf32>
    %cst = arith.constant dense<0.000000e+00> : vector<64x64xf32>
    %4 = tpu.matmul %1, %3, %cst {dimension_numbers = #tpu.dot_dimension_numbers<[1], [0], [0], [1], [0, 0, 1, 1], [], []>} : vector<64x64xf32>, vector<64x64xf32>, vector<64x64xf32> -> vector<64x64xf32>
    %c0_5 = arith.constant 0 : index
    %c0_6 = arith.constant 0 : index
    %c0_7 = arith.constant 0 : index
    %5 = vector.load %arg5[%c0_5, %c0_6, %c0_7] : memref<1x1x64xf32, #tpu.memory_space<vmem>>, vector<1x1x64xf32>
    %6 = vector.shape_cast %5 : vector<1x1x64xf32> to vector<1x64xf32>
    %7 = vector.broadcast %6 : vector<1x64xf32> to vector<64x64xf32>
    %8 = arith.addf %4, %7 : vector<64x64xf32>
    %cst_8 = arith.constant dense<0xFF800000> : vector<64xf32>
    %9 = vector.multi_reduction <maximumf>, %8, %cst_8 [1] : vector<64x64xf32> to vector<64xf32>
    %10 = vector.shape_cast %9 : vector<64xf32> to vector<64x1xf32>
    %11 = vector.broadcast %10 : vector<64x1xf32> to vector<64x64xf32>
    %12 = arith.subf %8, %11 : vector<64x64xf32>
    %13 = math.exp %12 : vector<64x64xf32>
    %cst_9 = arith.constant dense<0.000000e+00> : vector<64xf32>
    %14 = vector.multi_reduction <add>, %13, %cst_9 [1] : vector<64x64xf32> to vector<64xf32>
    %15 = vector.shape_cast %14 : vector<64xf32> to vector<64x1xf32>
    %16 = tpu.reciprocal %15 : vector<64x1xf32> -> vector<64x1xf32>
    %17 = vector.broadcast %16 : vector<64x1xf32> to vector<64x64xf32>
    %18 = arith.mulf %13, %17 : vector<64x64xf32>
    %c0_10 = arith.constant 0 : index
    %c0_11 = arith.constant 0 : index
    %c0_12 = arith.constant 0 : index
    %19 = vector.load %arg9[%c0_10, %c0_11, %c0_12] : memref<1x64x64xf32, #tpu.memory_space<vmem>>, vector<1x64x64xf32>
    %20 = vector.shape_cast %19 : vector<1x64x64xf32> to vector<64x64xf32>
    %21 = vector.shape_cast %18 : vector<64x64xf32> to vector<1x64x64xf32>
    tpu.vector_store %arg9[%c0_10, %c0_11, %c0_12], %21 {strides = array<i32>} : memref<1x64x64xf32, #tpu.memory_space<vmem>>, vector<1x64x64xf32>,
    %c0_13 = arith.constant 0 : index
    %c0_14 = arith.constant 0 : index
    %c0_15 = arith.constant 0 : index
    %22 = vector.load %arg6[%c0_13, %c0_14, %c0_15] : memref<1x64x64xf32, #tpu.memory_space<vmem>>, vector<1x64x64xf32>
    %23 = vector.shape_cast %22 : vector<1x64x64xf32> to vector<64x64xf32>
    %cst_16 = arith.constant dense<0.000000e+00> : vector<64x64xf32>
    %24 = tpu.matmul %23, %18, %cst_16 {dimension_numbers = #tpu.dot_dimension_numbers<[1], [1], [0], [0], [0, 0, 1, 0], [], []>} : vector<64x64xf32>, vector<64x64xf32>, vector<64x64xf32> -> vector<64x64xf32>
    %c0_17 = arith.constant 0 : index
    %c0_18 = arith.constant 0 : index
    %c0_19 = arith.constant 0 : index
    %25 = vector.load %arg3[%c0_17, %c0_18, %c0_19] : memref<1x64x64xf32, #tpu.memory_space<vmem>>, vector<1x64x64xf32>
    %26 = vector.shape_cast %25 : vector<1x64x64xf32> to vector<64x64xf32>
    %c0_20 = arith.constant 0 : index
    %27 = memref.load %arg7[%c0_20] : memref<1xf32, #tpu.memory_space<smem>>
    %28 = vector.broadcast %27 : f32 to vector<64x64xf32>
    %29 = arith.mulf %28, %24 : vector<64x64xf32>
    %30 = arith.addf %26, %29 : vector<64x64xf32>
    %c0_21 = arith.constant 0 : index
    %c0_22 = arith.constant 0 : index
    %c0_23 = arith.constant 0 : index
    %31 = vector.load %arg8[%c0_21, %c0_22, %c0_23] : memref<1x64x64xf32, #tpu.memory_space<vmem>>, vector<1x64x64xf32>
    %32 = vector.shape_cast %31 : vector<1x64x64xf32> to vector<64x64xf32>
    %33 = vector.shape_cast %30 : vector<64x64xf32> to vector<1x64x64xf32>
    tpu.vector_store %arg8[%c0_21, %c0_22, %c0_23], %33 {strides = array<i32>} : memref<1x64x64xf32, #tpu.memory_space<vmem>>, vector<1x64x64xf32>,
    return
  }
  func.func @transform_0(%arg0: i32, %arg1: i32) -> (i32, i32, i32) {
    %c0_i32 = arith.constant 0 : i32
    %c0_i32_0 = arith.constant 0 : i32
    return %arg0, %arg1, %c0_i32 : i32, i32, i32
  }
  func.func @transform_1(%arg0: i32, %arg1: i32) -> (i32, i32, i32) {
    %c0_i32 = arith.constant 0 : i32
    %c0_i32_0 = arith.constant 0 : i32
    return %arg0, %c0_i32, %arg1 : i32, i32, i32
  }
  func.func @transform_2(%arg0: i32, %arg1: i32) -> (i32, i32, i32) {
    %c0_i32 = arith.constant 0 : i32
    %c0_i32_0 = arith.constant 0 : i32
    %c0_i32_1 = arith.constant 0 : i32
    return %arg0, %c0_i32, %c0_i32_0 : i32, i32, i32
  }
  func.func @transform_3(%arg0: i32, %arg1: i32) -> (i32, i32, i32) {
    %c0_i32 = arith.constant 0 : i32
    %c0_i32_0 = arith.constant 0 : i32
    %c0_i32_1 = arith.constant 0 : i32
    return %arg0, %c0_i32, %c0_i32_0 : i32, i32, i32
  }
  func.func @transform_4(%arg0: i32, %arg1: i32) -> (i32, i32, i32) {
    %c0_i32 = arith.constant 0 : i32
    %c0_i32_0 = arith.constant 0 : i32
    %c0_i32_1 = arith.constant 0 : i32
    return %arg0, %c0_i32, %c0_i32_0 : i32, i32, i32
  }
  func.func @transform_5(%arg0: i32, %arg1: i32) -> i32 {
    %c0_i32 = arith.constant 0 : i32
    %c0_i32_0 = arith.constant 0 : i32
    return %c0_i32 : i32
  }
  func.func @transform_6(%arg0: i32, %arg1: i32) -> (i32, i32, i32) {
    %c0_i32 = arith.constant 0 : i32
    %c0_i32_0 = arith.constant 0 : i32
    return %arg0, %c0_i32, %arg1 : i32, i32, i32
  }
  func.func @transform_7(%arg0: i32, %arg1: i32) -> (i32, i32, i32) {
    %c0_i32 = arith.constant 0 : i32
    %c0_i32_0 = arith.constant 0 : i32
    return %arg0, %arg1, %c0_i32 : i32, i32, i32
  }
}

</mosaic_0001>

<llo_original>
// kernel: self_attention_forward.1
$region0: #{self_attention_forward.1}
  #allocation0 [shape = 'u32[]', space=smem, size = 0x4, offset = 0x4, fixed_abs, tag = 'smem constant byte address 0x4 - core index']
  #allocation1 [shape = 'u32[144,128]{1,0:T(1,128)}', space=vmem, size = 0x12000, scoped, tag = 'internal scratch']
  #allocation2 [shape = 'f32[1]{0:T(128)S(6)}', space=smem, size = 0x200, scoped, tag = 'scoped memory for self_attention_forward.1']
  %s0 = inlined_call_operand.vmem [shape: f32[2,64,64], index: 0, kind: input, shape index: {}]
  %s1 = inlined_call_operand.vmem [shape: f32[2,64,64], index: 1, kind: input, shape index: {}]
  %s2 = inlined_call_operand.vmem [shape: f32[2,64,64], index: 2, kind: input, shape index: {}]
  %s3 = inlined_call_operand.vmem [shape: f32[2,1,64], index: 3, kind: input, shape index: {}]
  %s4 = inlined_call_operand.vmem [shape: f32[2,64,64], index: 4, kind: input, shape index: {}]
  %s5 = inlined_call_operand.<no memory space> [shape: f32[1], index: 5, kind: input, shape index: {}]
  %s6 = inlined_call_operand.vmem [shape: f32[2,64,64], index: 6, kind: output, shape index: {0}]
  %s7 = inlined_call_operand.hbm [shape: f32[2,64,64], index: 7, kind: output, shape index: {1}]
  %8 = xla_tuple %s6, %s7
  %s9 = sld [smem:[#allocation0]]
  $region65: #{self_attention_forward.1} parent=0
    _
  %s11 = ssub.s32 1, %s9
  %s12 = scalar_select 0, %s11, %s9
  %13 = sst [smem:[#allocation2]] %s5
  $region1: #{self_attention_forward.1} parent=0
    #allocation3 [shape = 'u8[65536]{0}', space=vmem, size = 0x10000, scoped, tag = 'output window, operand 1']
    #allocation4 [shape = 's32[2]{0}', space=sflag, size = 0x8, scoped, tag = 'scoped memory for self_attention_forward.1']
    %14 = vsyncpa [#allocation4], 0
    %s15 = scalar_lea.sflag [#allocation4], 1
    %16 = vsyncpa %s15, 0
    loop: start=0, step=1, limit=4
    $region2: #{self_attention_forward.1} parent=1 // loop_pre_header
      _
    $region3: #{self_attention_forward.1} parent=1 // loop_header
      %s18 = sphi 0, %s22
      %p19 = scmp.ge.s32.totalorder %s18, 4
      %s25 = sphi 0, %s37
      %s26 = sphi 0, %s33
      %s27 = sphi 0, %s25
      %s28 = sphi 0, %s26
      %s29 = sphi 0, %s27
      %s30 = sphi 0, %s28
      %s42 = sphi 0, %s44
      %s45 = sphi 0, %s42
      %s46 = sphi 0, %s45
      %s62 = sphi 0, %s46
      %s70 = sphi 0, %s72
      %s73 = sphi 0, %s70
      %s74 = sphi 0, %s73
      %s90 = sphi 0, %s74
      %s96 = sphi 0, %s98
      %s99 = sphi 0, %s96
      %s100 = sphi 0, %s99
      %s116 = sphi 0, %s100
      %s122 = sphi 0, %s124
      %s125 = sphi 0, %s122
      %s126 = sphi 0, %s125
      %s142 = sphi 0, %s126
      %s148 = sphi 0, %s150
      %s151 = sphi 0, %s148
      %s152 = sphi 0, %s151
      %s168 = sphi 0, %s152
      %s172 = sphi 0, %s172
      %s174 = sphi 0, %s172
      %s175 = sphi 0, %s174
      %s189 = sphi 0, %s175
      %s197 = sphi 0, %s199
      %s200 = sphi 0, %s197
      %s201 = sphi 0, %s200
      %s217 = sphi 0, %s201
      %s225 = sphi 0, %s227
      %s228 = sphi 0, %s225
      %s229 = sphi 0, %s228
      %s245 = sphi 0, %s229
    $region4: #{self_attention_forward.1} parent=1 // loop_header_branch
      %21 = sbr.rel (%p19) target = $region8
    $region5: #{self_attention_forward.1} parent=1 // loop_body
      %s23 = ssub.s32 %s18, 1
      %s24 = ssub.s32 %s18, 2
      %s31 = sadd.s32 1, %s26
      %p32 = scmp.ge.s32.totalorder %s31, 1
      %s33 = scalar_select %p32, 0, %s31
      %s34 = sadd.s32 1, %s25
      %s35 = scalar_select %p32, %s34, %s25
      %p36 = scmp.ge.s32.totalorder %s35, 2
      %s37 = scalar_select %p36, 0, %s35
      %s38 = ssub.s32 %s25, %s37
      %s39 = ssub.s32 %s26, %s33
      %s40 = sor.u32 %s38, %s39
      %p41 = scmp.eq.s32.totalorder %s40, 0
      %s43 = sadd.s32 %s42, 1
      %s44 = scalar_select %p41, %s42, %s43
      %p47 = pneg %p41
      %p48 = scmp.eq.s32.totalorder %s18, 1
      %p49 = por %p47, %p48
      %p50 = scmp.ne.s32.totalorder %s42, %s45
      %p51 = scmp.eq.s32.totalorder %s18, 0
      %p52 = por %p50, %p51
      %p53 = scmp.ne.s32.totalorder %s42, %s45
      %p54 = scmp.eq.s32.totalorder %s23, 1
      %p55 = por %p53, %p54
      %p56 = scmp.ne.s32.totalorder %s45, %s46
      %p57 = scmp.eq.s32.totalorder %s23, 0
      %p58 = por %p56, %p57
      %p59 = scmp.ne.s32.totalorder %s45, %s46
      %p60 = scmp.eq.s32.totalorder %s24, 1
      %p61 = por %p59, %p60
      %p63 = scmp.ne.s32.totalorder %s46, %s62
      %p64 = scmp.eq.s32.totalorder %s24, 0
      %p65 = por %p63, %p64
      %s66 = ssub.s32 %s25, %s37
      %s67 = ssub.s32 %s26, %s33
      %s68 = sor.u32 %s66, %s67
      %p69 = scmp.eq.s32.totalorder %s68, 0
      %s71 = sadd.s32 %s70, 1
      %s72 = scalar_select %p69, %s70, %s71
      %p75 = pneg %p69
      %p76 = scmp.eq.s32.totalorder %s18, 1
      %p77 = por %p75, %p76
      %p78 = scmp.ne.s32.totalorder %s70, %s73
      %p79 = scmp.eq.s32.totalorder %s18, 0
      %p80 = por %p78, %p79
      %p81 = scmp.ne.s32.totalorder %s70, %s73
      %p82 = scmp.eq.s32.totalorder %s23, 1
      %p83 = por %p81, %p82
      %p84 = scmp.ne.s32.totalorder %s73, %s74
      %p85 = scmp.eq.s32.totalorder %s23, 0
      %p86 = por %p84, %p85
      %p87 = scmp.ne.s32.totalorder %s73, %s74
      %p88 = scmp.eq.s32.totalorder %s24, 1
      %p89 = por %p87, %p88
      %p91 = scmp.ne.s32.totalorder %s74, %s90
      %p92 = scmp.eq.s32.totalorder %s24, 0
      %p93 = por %p91, %p92
      %s94 = ssub.s32 %s25, %s37
      %p95 = scmp.eq.s32.totalorder %s94, 0
      %s97 = sadd.s32 %s96, 1
      %s98 = scalar_select %p95, %s96, %s97
      %p101 = pneg %p95
      %p102 = scmp.eq.s32.totalorder %s18, 1
      %p103 = por %p101, %p102
      %p104 = scmp.ne.s32.totalorder %s96, %s99
      %p105 = scmp.eq.s32.totalorder %s18, 0
      %p106 = por %p104, %p105
      %p107 = scmp.ne.s32.totalorder %s96, %s99
      %p108 = scmp.eq.s32.totalorder %s23, 1
      %p109 = por %p107, %p108
      %p110 = scmp.ne.s32.totalorder %s99, %s100
      %p111 = scmp.eq.s32.totalorder %s23, 0
      %p112 = por %p110, %p111
      %p113 = scmp.ne.s32.totalorder %s99, %s100
      %p114 = scmp.eq.s32.totalorder %s24, 1
      %p115 = por %p113, %p114
      %p117 = scmp.ne.s32.totalorder %s100, %s116
      %p118 = scmp.eq.s32.totalorder %s24, 0
      %p119 = por %p117, %p118
      %s120 = ssub.s32 %s25, %s37
      %p121 = scmp.eq.s32.totalorder %s120, 0
      %s123 = sadd.s32 %s122, 1
      %s124 = scalar_select %p121, %s122, %s123
      %p127 = pneg %p121
      %p128 = scmp.eq.s32.totalorder %s18, 1
      %p129 = por %p127, %p128
      %p130 = scmp.ne.s32.totalorder %s122, %s125
      %p131 = scmp.eq.s32.totalorder %s18, 0
      %p132 = por %p130, %p131
      %p133 = scmp.ne.s32.totalorder %s122, %s125
      %p134 = scmp.eq.s32.totalorder %s23, 1
      %p135 = por %p133, %p134
      %p136 = scmp.ne.s32.totalorder %s125, %s126
      %p137 = scmp.eq.s32.totalorder %s23, 0
      %p138 = por %p136, %p137
      %p139 = scmp.ne.s32.totalorder %s125, %s126
      %p140 = scmp.eq.s32.totalorder %s24, 1
      %p141 = por %p139, %p140
      %p143 = scmp.ne.s32.totalorder %s126, %s142
      %p144 = scmp.eq.s32.totalorder %s24, 0
      %p145 = por %p143, %p144
      %s146 = ssub.s32 %s25, %s37
      %p147 = scmp.eq.s32.totalorder %s146, 0
      %s149 = sadd.s32 %s148, 1
      %s150 = scalar_select %p147, %s148, %s149
      %p153 = pneg %p147
      %p154 = scmp.eq.s32.totalorder %s18, 1
      %p155 = por %p153, %p154
      %p156 = scmp.ne.s32.totalorder %s148, %s151
      %p157 = scmp.eq.s32.totalorder %s18, 0
      %p158 = por %p156, %p157
      %p159 = scmp.ne.s32.totalorder %s148, %s151
      %p160 = scmp.eq.s32.totalorder %s23, 1
      %p161 = por %p159, %p160
      %p162 = scmp.ne.s32.totalorder %s151, %s152
      %p163 = scmp.eq.s32.totalorder %s23, 0
      %p164 = por %p162, %p163
      %p165 = scmp.ne.s32.totalorder %s151, %s152
      %p166 = scmp.eq.s32.totalorder %s24, 1
      %p167 = por %p165, %p166
      %p169 = scmp.ne.s32.totalorder %s152, %s168
      %p170 = scmp.eq.s32.totalorder %s24, 0
      %p171 = por %p169, %p170
      %s173 = sadd.s32 %s172, 1
      %p176 = scmp.eq.s32.totalorder %s18, 1
      %p177 = scmp.ne.s32.totalorder %s172, %s174
      %p178 = scmp.eq.s32.totalorder %s18, 0
      %p179 = por %p177, %p178
      %p180 = scmp.ne.s32.totalorder %s172, %s174
      %p181 = scmp.eq.s32.totalorder %s23, 1
      %p182 = por %p180, %p181
      %p183 = scmp.ne.s32.totalorder %s174, %s175
      %p184 = scmp.eq.s32.totalorder %s23, 0
      %p185 = por %p183, %p184
      %p186 = scmp.ne.s32.totalorder %s174, %s175
      %p187 = scmp.eq.s32.totalorder %s24, 1
      %p188 = por %p186, %p187
      %p190 = scmp.ne.s32.totalorder %s175, %s189
      %p191 = scmp.eq.s32.totalorder %s24, 0
      %p192 = por %p190, %p191
      %s193 = ssub.s32 %s25, %s37
      %s194 = ssub.s32 %s26, %s33
      %s195 = sor.u32 %s193, %s194
      %p196 = scmp.eq.s32.totalorder %s195, 0
      %s198 = sadd.s32 %s197, 1
      %s199 = scalar_select %p196, %s197, %s198
      %p202 = pneg %p196
      %p203 = scmp.eq.s32.totalorder %s18, 1
      %p204 = por %p202, %p203
      %p205 = scmp.ne.s32.totalorder %s197, %s200
      %p206 = scmp.eq.s32.totalorder %s18, 0
      %p207 = por %p205, %p206
      %p208 = scmp.ne.s32.totalorder %s197, %s200
      %p209 = scmp.eq.s32.totalorder %s23, 1
      %p210 = por %p208, %p209
      %p211 = scmp.ne.s32.totalorder %s200, %s201
      %p212 = scmp.eq.s32.totalorder %s23, 0
      %p213 = por %p211, %p212
      %p214 = scmp.ne.s32.totalorder %s200, %s201
      %p215 = scmp.eq.s32.totalorder %s24, 1
      %p216 = por %p214, %p215
      %p218 = scmp.ne.s32.totalorder %s201, %s217
      %p219 = scmp.eq.s32.totalorder %s24, 0
      %p220 = por %p218, %p219
      %s221 = ssub.s32 %s25, %s37
      %s222 = ssub.s32 %s26, %s33
      %s223 = sor.u32 %s221, %s222
      %p224 = scmp.eq.s32.totalorder %s223, 0
      %s226 = sadd.s32 %s225, 1
      %s227 = scalar_select %p224, %s225, %s226
      %p230 = pneg %p224
      %p231 = scmp.eq.s32.totalorder %s18, 1
      %p232 = por %p230, %p231
      %p233 = scmp.ne.s32.totalorder %s225, %s228
      %p234 = scmp.eq.s32.totalorder %s18, 0
      %p235 = por %p233, %p234
      %p236 = scmp.ne.s32.totalorder %s225, %s228
      %p237 = scmp.eq.s32.totalorder %s23, 1
      %p238 = por %p236, %p237
      %p239 = scmp.ne.s32.totalorder %s228, %s229
      %p240 = scmp.eq.s32.totalorder %s23, 0
      %p241 = por %p239, %p240
      %p242 = scmp.ne.s32.totalorder %s228, %s229
      %p243 = scmp.eq.s32.totalorder %s24, 1
      %p244 = por %p242, %p243
      %p246 = scmp.ne.s32.totalorder %s229, %s245
      %p247 = scmp.eq.s32.totalorder %s24, 0
      %p248 = por %p246, %p247
      %p249 = scmp.le.s32.totalorder 1, %s18
      %p250 = scmp.lt.s32.totalorder %s18, 3
      %p251 = pnand %p249, %p250
      %p252 = pneg %p251
      // Predicated region
      $region9: #{self_attention_forward.1} parent=5 // pred_check
        _
      $region10: #{self_attention_forward.1} parent=5 // pred_check_branch
        %254 = sbr.rel (%p251) target = $region12
      $region11: #{self_attention_forward.1} parent=5 // pred_region
        %s255 = ssub.s32 %s18, 1
        // Predicated region
        $region13: #{self_attention_forward.1} parent=11 // pred_check
          %p256 = pneg %p185
        $region14: #{self_attention_forward.1} parent=11 // pred_check_branch
          %258 = sbr.rel (%p256) target = $region16
        $region15: #{self_attention_forward.1} parent=11 // pred_region
          _
        $region16: #{self_attention_forward.1} parent=11 // pred_fallthru
          _
      $region12: #{self_attention_forward.1} parent=5 // pred_fallthru
        _
      %p259 = scmp.lt.s32.totalorder %s18, 2
      // Predicated region
      $region17: #{self_attention_forward.1} parent=5 // pred_check
        %p260 = pneg %p259
      $region18: #{self_attention_forward.1} parent=5 // pred_check_branch
        %262 = sbr.rel (%p260) target = $region20
      $region19: #{self_attention_forward.1} parent=5 // pred_region
        // Predicated region
        $region21: #{self_attention_forward.1} parent=19 // pred_check
          %p263 = pneg %p52
        $region22: #{self_attention_forward.1} parent=19 // pred_check_branch
          %265 = sbr.rel (%p263) target = $region24
        $region23: #{self_attention_forward.1} parent=19 // pred_region
          %s266 = smul.u32 8, %s26
          %p267 = scmp.lt.s32.totalorder %s25, 1
          %s268 = scalar_select %p267, %s25, 1
          %p269 = scmp.lt.s32.totalorder %s266, 7
          %s270 = scalar_select %p269, %s266, 7
          %s271 = smul.addr %s268, 8
          %s272 = sadd.s32 %s270, %s271
          %s273 = smul.addr %s272, 8
          %s274 = scalar_lea.vmem %s0, %s273
          %s275 = smul.u32 8, %s26
        $region24: #{self_attention_forward.1} parent=19 // pred_fallthru
          _
        // Predicated region
        $region25: #{self_attention_forward.1} parent=19 // pred_check
          %p276 = pneg %p80
        $region26: #{self_attention_forward.1} parent=19 // pred_check_branch
          %278 = sbr.rel (%p276) target = $region28
        $region27: #{self_attention_forward.1} parent=19 // pred_region
          %p279 = scmp.lt.s32.totalorder %s25, 1
          %s280 = scalar_select %p279, %s25, 1
          %p281 = scmp.lt.s32.totalorder %s26, 0
          %s282 = scalar_select %p281, %s26, 0
          %s283 = smul.addr %s280, 8
          %s284 = sadd.s32 %s282, %s283
          %s285 = smul.addr %s284, 8
          %s286 = scalar_lea.vmem %s1, %s285
        $region28: #{self_attention_forward.1} parent=19 // pred_fallthru
          _
        // Predicated region
        $region29: #{self_attention_forward.1} parent=19 // pred_check
          %p287 = pneg %p106
        $region30: #{self_attention_forward.1} parent=19 // pred_check_branch
          %289 = sbr.rel (%p287) target = $region32
        $region31: #{self_attention_forward.1} parent=19 // pred_region
          %p290 = scmp.lt.s32.totalorder %s25, 1
          %s291 = scalar_select %p290, %s25, 1
          %s292 = smul.addr %s291, 8
          %s293 = smul.addr %s292, 8
          %s294 = scalar_lea.vmem %s2, %s293
        $region32: #{self_attention_forward.1} parent=19 // pred_fallthru
          _
        // Predicated region
        $region33: #{self_attention_forward.1} parent=19 // pred_check
          %p295 = pneg %p132
        $region34: #{self_attention_forward.1} parent=19 // pred_check_branch
          %297 = sbr.rel (%p295) target = $region36
        $region35: #{self_attention_forward.1} parent=19 // pred_region
          %p298 = scmp.lt.s32.totalorder %s25, 1
          %s299 = scalar_select %p298, %s25, 1
          %s300 = scalar_lea.vmem %s3, %s299
        $region36: #{self_attention_forward.1} parent=19 // pred_fallthru
          _
        // Predicated region
        $region37: #{self_attention_forward.1} parent=19 // pred_check
          %p301 = pneg %p158
        $region38: #{self_attention_forward.1} parent=19 // pred_check_branch
          %303 = sbr.rel (%p301) target = $region40
        $region39: #{self_attention_forward.1} parent=19 // pred_region
          %p304 = scmp.lt.s32.totalorder %s25, 1
          %s305 = scalar_select %p304, %s25, 1
          %s306 = smul.addr %s305, 8
          %s307 = smul.addr %s306, 8
          %s308 = scalar_lea.vmem %s4, %s307
        $region40: #{self_attention_forward.1} parent=19 // pred_fallthru
          _
      $region20: #{self_attention_forward.1} parent=5 // pred_fallthru
        _
      %p309 = scmp.le.s32.totalorder 1, %s18
      %p310 = scmp.lt.s32.totalorder %s18, 3
      %p311 = pnand %p309, %p310
      %p312 = pneg %p311
      // Predicated region
      $region41: #{self_attention_forward.1} parent=5 // pred_check
        _
      $region42: #{self_attention_forward.1} parent=5 // pred_check_branch
        %314 = sbr.rel (%p311) target = $region44
      $region43: #{self_attention_forward.1} parent=5 // pred_region
        %s315 = ssub.s32 %s18, 1
        %s316 = smul.u32 8, %s28
        %p317 = scmp.lt.s32.totalorder %s27, 1
        %s318 = scalar_select %p317, %s27, 1
        %p319 = scmp.lt.s32.totalorder %s316, 7
        %s320 = scalar_select %p319, %s316, 7
        %s321 = smul.addr %s318, 8
        %s322 = sadd.s32 %s320, %s321
        %s323 = smul.addr %s322, 8
        %s324 = scalar_lea.vmem %s0, %s323
        %p325 = pneg %p58
        %p326 = pneg %p55
        %p327 = scmp.lt.s32.totalorder %s27, 1
        %s328 = scalar_select %p327, %s27, 1
        %p329 = scmp.lt.s32.totalorder %s28, 0
        %s330 = scalar_select %p329, %s28, 0
        %s331 = smul.addr %s328, 8
        %s332 = sadd.s32 %s330, %s331
        %s333 = smul.addr %s332, 8
        %s334 = scalar_lea.vmem %s1, %s333
        %p335 = pneg %p86
        %p336 = pneg %p83
        %p337 = scmp.lt.s32.totalorder %s27, 1
        %s338 = scalar_select %p337, %s27, 1
        %s339 = smul.addr %s338, 8
        %s340 = smul.addr %s339, 8
        %s341 = scalar_lea.vmem %s2, %s340
        %p342 = pneg %p112
        %p343 = pneg %p109
        %p344 = scmp.lt.s32.totalorder %s27, 1
        %s345 = scalar_select %p344, %s27, 1
        %s346 = scalar_lea.vmem %s3, %s345
        %p347 = pneg %p138
        %p348 = pneg %p135
        %p349 = scmp.lt.s32.totalorder %s27, 1
        %s350 = scalar_select %p349, %s27, 1
        %s351 = smul.addr %s350, 8
        %s352 = smul.addr %s351, 8
        %s353 = scalar_lea.vmem %s4, %s352
        %p354 = pneg %p164
        %p355 = pneg %p161
        %p356 = pneg %p185
        %p357 = pneg %p182
        %p358 = pneg %p213
        %p359 = pneg %p210
        %p360 = scmp.lt.s32.totalorder %s27, 1
        %s361 = scalar_select %p360, %s27, 1
        %p362 = scmp.lt.s32.totalorder %s28, 0
        %s363 = scalar_select %p362, %s28, 0
        %s364 = smul.addr %s361, 8
        %s365 = sadd.s32 %s363, %s364
        %s366 = smul.addr %s365, 8
        %s367 = scalar_lea.vmem %s6, %s366
        %p368 = pneg %p241
        %p369 = pneg %p238
        %s370 = sand.u32 %s228, 1
        %s371 = scalar_lea.sflag [#allocation4], %s370
        %s372 = sand.u32 %s228, 1
        %s373 = smul.addr %s372, 64
        %s374 = scalar_lea.vmem [#allocation3], %s373
        %s375 = smul.u32 8, %s28
        %p376 = scmp.lt.s32.totalorder %s27, 1
        %s377 = scalar_select %p376, %s27, 1
        %p378 = scmp.lt.s32.totalorder %s375, 7
        %s379 = scalar_select %p378, %s375, 7
        %s380 = smul.addr %s377, 8
        %s381 = sadd.s32 %s379, %s380
        %s382 = smul.addr %s381, 8
        %s383 = scalar_lea.vmem %s0, %s382
        %s384 = smul.u32 8, %s28
        %p385 = scmp.lt.s32.totalorder %s27, 1
        %s386 = scalar_select %p385, %s27, 1
        %p387 = scmp.lt.s32.totalorder %s28, 0
        %s388 = scalar_select %p387, %s28, 0
        %s389 = smul.addr %s386, 8
        %s390 = sadd.s32 %s388, %s389
        %s391 = smul.addr %s390, 8
        %s392 = scalar_lea.vmem %s1, %s391
        %p393 = scmp.lt.s32.totalorder %s27, 1
        %s394 = scalar_select %p393, %s27, 1
        %s395 = smul.addr %s394, 8
        %s396 = smul.addr %s395, 8
        %s397 = scalar_lea.vmem %s2, %s396
        %p398 = scmp.lt.s32.totalorder %s27, 1
        %s399 = scalar_select %p398, %s27, 1
        %s400 = scalar_lea.vmem %s3, %s399
        %p401 = scmp.lt.s32.totalorder %s27, 1
        %s402 = scalar_select %p401, %s27, 1
        %s403 = smul.addr %s402, 8
        %s404 = smul.addr %s403, 8
        %s405 = scalar_lea.vmem %s4, %s404
        %p406 = scmp.lt.s32.totalorder %s27, 1
        %s407 = scalar_select %p406, %s27, 1
        %p408 = scmp.lt.s32.totalorder %s28, 0
        %s409 = scalar_select %p408, %s28, 0
        %s410 = smul.addr %s407, 8
        %s411 = sadd.s32 %s409, %s410
        %s412 = smul.addr %s411, 8
        %s413 = scalar_lea.vmem %s6, %s412
        %s414 = smul.u32 8, %s28
        %v415 = vld [vmem:[%s383] sm:$0xff]
        %v416 = vld [vmem:[%s383 + $0x8] sm:$0xff]
        %v417 = vld [vmem:[%s383 + $0x10] sm:$0xff]
        %v418 = vld [vmem:[%s383 + $0x18] sm:$0xff]
        %v419 = vld [vmem:[%s383 + $0x20] sm:$0xff]
        %v420 = vld [vmem:[%s383 + $0x28] sm:$0xff]
        %v421 = vld [vmem:[%s383 + $0x30] sm:$0xff]
        %v422 = vld [vmem:[%s383 + $0x38] sm:$0xff]
        %v423 = vld [vmem:[%s397] sm:$0xff]
        %v424 = vld [vmem:[%s397 + $0x8] sm:$0xff]
        %v425 = vld [vmem:[%s397 + $0x10] sm:$0xff]
        %v426 = vld [vmem:[%s397 + $0x18] sm:$0xff]
        %v427 = vld [vmem:[%s397 + $0x20] sm:$0xff]
        %v428 = vld [vmem:[%s397 + $0x28] sm:$0xff]
        %v429 = vld [vmem:[%s397 + $0x30] sm:$0xff]
        %v430 = vld [vmem:[%s397 + $0x38] sm:$0xff]
        %v431 = vld [vmem:[%s400] sm:$0x1]
        %v433 = vlaneseq
        %v434 = vshrl.u32 %v433, 7
        %v435 = vsub.s32 0, %v434
        %v436 = vrot.slane %v431, %v435
        %vm438 = vcmask 523264
        %v440 = vsel %vm438, %v415, 0
        %v443 = vsel %vm438, %v416, 0
        %v446 = vsel %vm438, %v417, 0
        %v449 = vsel %vm438, %v418, 0
        %v452 = vsel %vm438, %v419, 0
        %v455 = vsel %vm438, %v420, 0
        %v458 = vsel %vm438, %v421, 0
        %v461 = vsel %vm438, %v422, 0
        %463 = vmatprep.subr.mxu0 0.0
        %464 = vmatpush1.msra.mxu0 %v423
        %465 = vmatprep.subr.mxu0 0.0
        %466 = vmatpush1.msra.mxu0 %v424
        %467 = vmatprep.subr.mxu0 0.0
        %468 = vmatpush1.msra.mxu0 %v425
        %469 = vmatprep.subr.mxu0 0.0
        %470 = vmatpush1.msra.mxu0 %v426
        %471 = vmatprep.subr.mxu0 0.0
        %472 = vmatpush1.msra.mxu0 %v427
        %473 = vmatprep.subr.mxu0 0.0
        %474 = vmatpush1.msra.mxu0 %v428
        %475 = vmatprep.subr.mxu0 0.0
        %476 = vmatpush1.msra.mxu0 %v429
        %477 = vmatprep.subr.mxu0 0.0
        %478 = vmatpush1.msra.mxu0 %v430
        %479 = vmatprep.subr.mxu0 0.0
        %480 = vmatpush1.msra.mxu0 0.0
        %481 = vmatprep.subr.mxu0 0.0
        %482 = vmatpush1.msra.mxu0 0.0
        %483 = vmatprep.subr.mxu0 0.0
        %484 = vmatpush1.msra.mxu0 0.0
        %485 = vmatprep.subr.mxu0 0.0
        %486 = vmatpush1.msra.mxu0 0.0
        %487 = vmatprep.subr.mxu0 0.0
        %488 = vmatpush1.msra.mxu0 0.0
        %489 = vmatprep.subr.mxu0 0.0
        %490 = vmatpush1.msra.mxu0 0.0
        %491 = vmatprep.subr.mxu0 0.0
        %492 = vmatpush1.msra.mxu0 0.0
        %493 = vmatprep.subr.mxu0 0.0
        %494 = vmatpush1.msra.mxu0 0.0
        %495 = vmatprep.subr.mxu0 0.0
        %496 = vmatpush1.msra.mxu0 0.0
        %497 = vmatprep.subr.mxu0 0.0
        %498 = vmatpush1.msra.mxu0 0.0
        %499 = vmatprep.subr.mxu0 0.0
        %500 = vmatpush1.msra.mxu0 0.0
        %501 = vmatprep.subr.mxu0 0.0
        %502 = vmatpush1.msra.mxu0 0.0
        %503 = vmatprep.subr.mxu0 0.0
        %504 = vmatpush1.msra.mxu0 0.0
        %505 = vmatprep.subr.mxu0 0.0
        %506 = vmatpush1.msra.mxu0 0.0
        %507 = vmatprep.subr.mxu0 0.0
        %508 = vmatpush1.msra.mxu0 0.0
        %509 = vmatprep.subr.mxu0 0.0
        %510 = vmatpush1.msra.mxu0 0.0
        %511 = vmatprep.subr.mxu0 0.0
        %512 = vmatpush1.msra.mxu0 0.0
        %513 = vmatprep.subr.mxu0 0.0
        %514 = vmatpush1.msra.mxu0 0.0
        %515 = vmatprep.subr.mxu0 0.0
        %516 = vmatpush1.msra.mxu0 0.0
        %517 = vmatprep.subr.mxu0 0.0
        %518 = vmatpush1.msra.mxu0 0.0
        %519 = vmatprep.subr.mxu0 0.0
        %520 = vmatpush1.msra.mxu0 0.0
        %521 = vmatprep.subr.mxu0 0.0
        %522 = vmatpush1.msra.mxu0 0.0
        %523 = vmatprep.subr.mxu0 0.0
        %524 = vmatpush1.msra.mxu0 0.0
        %525 = vmatprep.subr.mxu0 0.0
        %526 = vmatpush1.msra.mxu0 0.0
        %527 = vmatprep.mubr.f32.mxu0 0.0
        %528 = vmatmul.mubr.f32.gmra.mrb[0].mxu0 %v440
        %v529 = vpop.f32.mrb[0].mxu0
        %v530 = vadd.f32 %v436, %v529
        %v531 = vpop.f32.mrb[0].mxu0
        %532 = vmatprep.mubr.f32.mxu0 0.0
        %533 = vmatmul.mubr.f32.gmra.mrb[0].mxu0 %v443
        %v534 = vpop.f32.mrb[0].mxu0
        %v535 = vadd.f32 %v436, %v534
        %v536 = vpop.f32.mrb[0].mxu0
        %537 = vmatprep.mubr.f32.mxu0 0.0
        %538 = vmatmul.mubr.f32.gmra.mrb[0].mxu0 %v446
        %v539 = vpop.f32.mrb[0].mxu0
        %v540 = vadd.f32 %v436, %v539
        %v541 = vpop.f32.mrb[0].mxu0
        %542 = vmatprep.mubr.f32.mxu0 0.0
        %543 = vmatmul.mubr.f32.gmra.mrb[0].mxu0 %v449
        %v544 = vpop.f32.mrb[0].mxu0
        %v545 = vadd.f32 %v436, %v544
        %v546 = vpop.f32.mrb[0].mxu0
        %547 = vmatprep.mubr.f32.mxu0 0.0
        %548 = vmatmul.mubr.f32.gmra.mrb[0].mxu0 %v452
        %v549 = vpop.f32.mrb[0].mxu0
        %v550 = vadd.f32 %v436, %v549
        %v551 = vpop.f32.mrb[0].mxu0
        %552 = vmatprep.mubr.f32.mxu0 0.0
        %553 = vmatmul.mubr.f32.gmra.mrb[0].mxu0 %v455
        %v554 = vpop.f32.mrb[0].mxu0
        %v555 = vadd.f32 %v436, %v554
        %v556 = vpop.f32.mrb[0].mxu0
        %557 = vmatprep.mubr.f32.mxu0 0.0
        %558 = vmatmul.mubr.f32.gmra.mrb[0].mxu0 %v458
        %v559 = vpop.f32.mrb[0].mxu0
        %v560 = vadd.f32 %v436, %v559
        %v561 = vpop.f32.mrb[0].mxu0
        %562 = vmatprep.mubr.f32.mxu0 0.0
        %563 = vmatmul.mubr.f32.gmra.mrb[0].mxu0 %v461
        %v564 = vpop.f32.mrb[0].mxu0
        %v565 = vadd.f32 %v436, %v564
        %v566 = vpop.f32.mrb[0].mxu0
        %567 = vdwg.mxu0
        %v568 = vsel %vm438, %v530, -inf
        %569 = vmax.xlane.f32.xlu0 %v568
        %v570 = vpop.xlane.xlu0 %569
        %v571 = vsel %vm438, %v535, -inf
        %572 = vmax.xlane.f32.xlu0 %v571
        %v573 = vpop.xlane.xlu0 %572
        %v574 = vsel %vm438, %v540, -inf
        %575 = vmax.xlane.f32.xlu0 %v574
        %v576 = vpop.xlane.xlu0 %575
        %v577 = vsel %vm438, %v545, -inf
        %578 = vmax.xlane.f32.xlu0 %v577
        %v579 = vpop.xlane.xlu0 %578
        %v580 = vsel %vm438, %v550, -inf
        %581 = vmax.xlane.f32.xlu0 %v580
        %v582 = vpop.xlane.xlu0 %581
        %v583 = vsel %vm438, %v555, -inf
        %584 = vmax.xlane.f32.xlu0 %v583
        %v585 = vpop.xlane.xlu0 %584
        %v586 = vsel %vm438, %v560, -inf
        %587 = vmax.xlane.f32.xlu0 %v586
        %v588 = vpop.xlane.xlu0 %587
        %v589 = vsel %vm438, %v565, -inf
        %590 = vmax.xlane.f32.xlu0 %v589
        %v591 = vpop.xlane.xlu0 %590
        %v592 = vsub.f32 %v530, %v570
        %v593 = vsub.f32 %v535, %v573
        %v594 = vsub.f32 %v540, %v576
        %v595 = vsub.f32 %v545, %v579
        %v596 = vsub.f32 %v550, %v582
        %v597 = vsub.f32 %v555, %v585
        %v598 = vsub.f32 %v560, %v588
        %v599 = vsub.f32 %v565, %v591
        %v600 = vmul.f32 %v592, 1.442695
        %v601 = vpow.pop %v600
        %v602 = vmul.f32 %v593, 1.442695
        %v603 = vpow.pop %v602
        %v604 = vmul.f32 %v594, 1.442695
        %v605 = vpow.pop %v604
        %v606 = vmul.f32 %v595, 1.442695
        %v607 = vpow.pop %v606
        %v608 = vmul.f32 %v596, 1.442695
        %v609 = vpow.pop %v608
        %v610 = vmul.f32 %v597, 1.442695
        %v611 = vpow.pop %v610
        %v612 = vmul.f32 %v598, 1.442695
        %v613 = vpow.pop %v612
        %v614 = vmul.f32 %v599, 1.442695
        %v615 = vpow.pop %v614
        %v616 = vsel %vm438, %v601, 0.0
        %617 = vadd.xlane.f32.xlu0 %v616
        %v618 = vpop.xlane.xlu0 %617
        %v619 = vsel %vm438, %v603, 0.0
        %620 = vadd.xlane.f32.xlu0 %v619
        %v621 = vpop.xlane.xlu0 %620
        %v622 = vsel %vm438, %v605, 0.0
        %623 = vadd.xlane.f32.xlu0 %v622
        %v624 = vpop.xlane.xlu0 %623
        %v625 = vsel %vm438, %v607, 0.0
        %626 = vadd.xlane.f32.xlu0 %v625
        %v627 = vpop.xlane.xlu0 %626
        %v628 = vsel %vm438, %v609, 0.0
        %629 = vadd.xlane.f32.xlu0 %v628
        %v630 = vpop.xlane.xlu0 %629
        %v631 = vsel %vm438, %v611, 0.0
        %632 = vadd.xlane.f32.xlu0 %v631
        %v633 = vpop.xlane.xlu0 %632
        %v634 = vsel %vm438, %v613, 0.0
        %635 = vadd.xlane.f32.xlu0 %v634
        %v636 = vpop.xlane.xlu0 %635
        %v637 = vsel %vm438, %v615, 0.0
        %638 = vadd.xlane.f32.xlu0 %v637
        %v639 = vpop.xlane.xlu0 %638
        %v640 = vrcp.pop %v618
        %v641 = vrcp.pop %v621
        %v642 = vrcp.pop %v624
        %v643 = vrcp.pop %v627
        %v644 = vrcp.pop %v630
        %v645 = vrcp.pop %v633
        %v646 = vrcp.pop %v636
        %v647 = vrcp.pop %v639
        %v648 = vmul.f32 %v601, %v640
        %v649 = vmul.f32 %v603, %v641
        %v650 = vmul.f32 %v605, %v642
        %v651 = vmul.f32 %v607, %v643
        %v652 = vmul.f32 %v609, %v644
        %v653 = vmul.f32 %v611, %v645
        %v654 = vmul.f32 %v613, %v646
        %v655 = vmul.f32 %v615, %v647
        %656 = vst.msk [vmem:[%s374] sm:$0xff] %vm438, %v648
        %657 = vst.msk [vmem:[%s374 + $0x8] sm:$0xff] %vm438, %v649
        %658 = vst.msk [vmem:[%s374 + $0x10] sm:$0xff] %vm438, %v650
        %659 = vst.msk [vmem:[%s374 + $0x18] sm:$0xff] %vm438, %v651
        %660 = vst.msk [vmem:[%s374 + $0x20] sm:$0xff] %vm438, %v652
        %661 = vst.msk [vmem:[%s374 + $0x28] sm:$0xff] %vm438, %v653
        %662 = vst.msk [vmem:[%s374 + $0x30] sm:$0xff] %vm438, %v654
        %663 = vst.msk [vmem:[%s374 + $0x38] sm:$0xff] %vm438, %v655
        %v664 = vld [vmem:[%s405] sm:$0xff]
        %v665 = vld [vmem:[%s405 + $0x8] sm:$0xff]
        %v666 = vld [vmem:[%s405 + $0x10] sm:$0xff]
        %v667 = vld [vmem:[%s405 + $0x18] sm:$0xff]
        %v668 = vld [vmem:[%s405 + $0x20] sm:$0xff]
        %v669 = vld [vmem:[%s405 + $0x28] sm:$0xff]
        %v670 = vld [vmem:[%s405 + $0x30] sm:$0xff]
        %v671 = vld [vmem:[%s405 + $0x38] sm:$0xff]
        %v673 = vsel %vm438, %v664, 0
        %v676 = vsel %vm438, %v665, 0
        %v679 = vsel %vm438, %v666, 0
        %v682 = vsel %vm438, %v667, 0
        %v685 = vsel %vm438, %v668, 0
        %v688 = vsel %vm438, %v669, 0
        %v691 = vsel %vm438, %v670, 0
        %v694 = vsel %vm438, %v671, 0
        %v697 = vsel %vm438, %v648, 0
        %v700 = vsel %vm438, %v649, 0
        %v703 = vsel %vm438, %v650, 0
        %v706 = vsel %vm438, %v651, 0
        %v709 = vsel %vm438, %v652, 0
        %v712 = vsel %vm438, %v653, 0
        %v715 = vsel %vm438, %v654, 0
        %v718 = vsel %vm438, %v655, 0
        %720 = vmatprep.subr.mxu0 0.0
        %721 = vmatpush1.xpose.msra.mxu0 %v697
        %722 = vmatprep.subr.mxu0 0.0
        %723 = vmatpush1.xpose.msra.mxu0 %v700
        %724 = vmatprep.subr.mxu0 0.0
        %725 = vmatpush1.xpose.msra.mxu0 %v703
        %726 = vmatprep.subr.mxu0 0.0
        %727 = vmatpush1.xpose.msra.mxu0 %v706
        %728 = vmatprep.subr.mxu0 0.0
        %729 = vmatpush1.xpose.msra.mxu0 %v709
        %730 = vmatprep.subr.mxu0 0.0
        %731 = vmatpush1.xpose.msra.mxu0 %v712
        %732 = vmatprep.subr.mxu0 0.0
        %733 = vmatpush1.xpose.msra.mxu0 %v715
        %734 = vmatprep.subr.mxu0 0.0
        %735 = vmatpush1.xpose.msra.mxu0 %v718
        %736 = vmatprep.subr.mxu0 0.0
        %737 = vmatpush1.xpose.msra.mxu0 0.0
        %738 = vmatprep.subr.mxu0 0.0
        %739 = vmatpush1.xpose.msra.mxu0 0.0
        %740 = vmatprep.subr.mxu0 0.0
        %741 = vmatpush1.xpose.msra.mxu0 0.0
        %742 = vmatprep.subr.mxu0 0.0
        %743 = vmatpush1.xpose.msra.mxu0 0.0
        %744 = vmatprep.subr.mxu0 0.0
        %745 = vmatpush1.xpose.msra.mxu0 0.0
        %746 = vmatprep.subr.mxu0 0.0
        %747 = vmatpush1.xpose.msra.mxu0 0.0
        %748 = vmatprep.subr.mxu0 0.0
        %749 = vmatpush1.xpose.msra.mxu0 0.0
        %750 = vmatprep.subr.mxu0 0.0
        %751 = vmatpush1.xpose.msra.mxu0 0.0
        %752 = vmatprep.subr.mxu0 0.0
        %753 = vmatpush1.xpose.msra.mxu0 0.0
        %754 = vmatprep.subr.mxu0 0.0
        %755 = vmatpush1.xpose.msra.mxu0 0.0
        %756 = vmatprep.subr.mxu0 0.0
        %757 = vmatpush1.xpose.msra.mxu0 0.0
        %758 = vmatprep.subr.mxu0 0.0
        %759 = vmatpush1.xpose.msra.mxu0 0.0
        %760 = vmatprep.subr.mxu0 0.0
        %761 = vmatpush1.xpose.msra.mxu0 0.0
        %762 = vmatprep.subr.mxu0 0.0
        %763 = vmatpush1.xpose.msra.mxu0 0.0
        %764 = vmatprep.subr.mxu0 0.0
        %765 = vmatpush1.xpose.msra.mxu0 0.0
        %766 = vmatprep.subr.mxu0 0.0
        %767 = vmatpush1.xpose.msra.mxu0 0.0
        %768 = vmatprep.subr.mxu0 0.0
        %769 = vmatpush1.xpose.msra.mxu0 0.0
        %770 = vmatprep.subr.mxu0 0.0
        %771 = vmatpush1.xpose.msra.mxu0 0.0
        %772 = vmatprep.subr.mxu0 0.0
        %773 = vmatpush1.xpose.msra.mxu0 0.0
        %774 = vmatprep.subr.mxu0 0.0
        %775 = vmatpush1.xpose.msra.mxu0 0.0
        %776 = vmatprep.subr.mxu0 0.0
        %777 = vmatpush1.xpose.msra.mxu0 0.0
        %778 = vmatprep.subr.mxu0 0.0
        %779 = vmatpush1.xpose.msra.mxu0 0.0
        %780 = vmatprep.subr.mxu0 0.0
        %781 = vmatpush1.xpose.msra.mxu0 0.0
        %782 = vmatprep.subr.mxu0 0.0
        %783 = vmatpush1.xpose.msra.mxu0 0.0
        %784 = vmatprep.mubr.f32.mxu0 0.0
        %785 = vmatmul.mubr.f32.gmra.mrb[0].mxu0 %v673
        %v786 = vpop.f32.mrb[0].mxu0
        %v787 = vadd.f32 0.0, %v786
        %v788 = vpop.f32.mrb[0].mxu0
        %789 = vmatprep.mubr.f32.mxu0 0.0
        %790 = vmatmul.mubr.f32.gmra.mrb[0].mxu0 %v676
        %v791 = vpop.f32.mrb[0].mxu0
        %v792 = vadd.f32 0.0, %v791
        %v793 = vpop.f32.mrb[0].mxu0
        %794 = vmatprep.mubr.f32.mxu0 0.0
        %795 = vmatmul.mubr.f32.gmra.mrb[0].mxu0 %v679
        %v796 = vpop.f32.mrb[0].mxu0
        %v797 = vadd.f32 0.0, %v796
        %v798 = vpop.f32.mrb[0].mxu0
        %799 = vmatprep.mubr.f32.mxu0 0.0
        %800 = vmatmul.mubr.f32.gmra.mrb[0].mxu0 %v682
        %v801 = vpop.f32.mrb[0].mxu0
        %v802 = vadd.f32 0.0, %v801
        %v803 = vpop.f32.mrb[0].mxu0
        %804 = vmatprep.mubr.f32.mxu0 0.0
        %805 = vmatmul.mubr.f32.gmra.mrb[0].mxu0 %v685
        %v806 = vpop.f32.mrb[0].mxu0
        %v807 = vadd.f32 0.0, %v806
        %v808 = vpop.f32.mrb[0].mxu0
        %809 = vmatprep.mubr.f32.mxu0 0.0
        %810 = vmatmul.mubr.f32.gmra.mrb[0].mxu0 %v688
        %v811 = vpop.f32.mrb[0].mxu0
        %v812 = vadd.f32 0.0, %v811
        %v813 = vpop.f32.mrb[0].mxu0
        %814 = vmatprep.mubr.f32.mxu0 0.0
        %815 = vmatmul.mubr.f32.gmra.mrb[0].mxu0 %v691
        %v816 = vpop.f32.mrb[0].mxu0
        %v817 = vadd.f32 0.0, %v816
        %v818 = vpop.f32.mrb[0].mxu0
        %819 = vmatprep.mubr.f32.mxu0 0.0
        %820 = vmatmul.mubr.f32.gmra.mrb[0].mxu0 %v694
        %v821 = vpop.f32.mrb[0].mxu0
        %v822 = vadd.f32 0.0, %v821
        %v823 = vpop.f32.mrb[0].mxu0
        %824 = vdwg.mxu0
        %v825 = vld [vmem:[%s392] sm:$0xff]
        %v826 = vld [vmem:[%s392 + $0x8] sm:$0xff]
        %v827 = vld [vmem:[%s392 + $0x10] sm:$0xff]
        %v828 = vld [vmem:[%s392 + $0x18] sm:$0xff]
        %v829 = vld [vmem:[%s392 + $0x20] sm:$0xff]
        %v830 = vld [vmem:[%s392 + $0x28] sm:$0xff]
        %v831 = vld [vmem:[%s392 + $0x30] sm:$0xff]
        %v832 = vld [vmem:[%s392 + $0x38] sm:$0xff]
        %s833 = sld [smem:[#allocation2]]
        %v834 = vstv %s833
        %v835 = vmul.f32 %v834, %v787
        %v836 = vmul.f32 %v834, %v792
        %v837 = vmul.f32 %v834, %v797
        %v838 = vmul.f32 %v834, %v802
        %v839 = vmul.f32 %v834, %v807
        %v840 = vmul.f32 %v834, %v812
        %v841 = vmul.f32 %v834, %v817
        %v842 = vmul.f32 %v834, %v822
        %v843 = vadd.f32 %v825, %v835
        %v844 = vadd.f32 %v826, %v836
        %v845 = vadd.f32 %v827, %v837
        %v846 = vadd.f32 %v828, %v838
        %v847 = vadd.f32 %v829, %v839
        %v848 = vadd.f32 %v830, %v840
        %v849 = vadd.f32 %v831, %v841
        %v850 = vadd.f32 %v832, %v842
        %851 = vst.msk [vmem:[%s413] sm:$0xff] %vm438, %v843
        %852 = vst.msk [vmem:[%s413 + $0x8] sm:$0xff] %vm438, %v844
        %853 = vst.msk [vmem:[%s413 + $0x10] sm:$0xff] %vm438, %v845
        %854 = vst.msk [vmem:[%s413 + $0x18] sm:$0xff] %vm438, %v846
        %855 = vst.msk [vmem:[%s413 + $0x20] sm:$0xff] %vm438, %v847
        %856 = vst.msk [vmem:[%s413 + $0x28] sm:$0xff] %vm438, %v848
        %857 = vst.msk [vmem:[%s413 + $0x30] sm:$0xff] %vm438, %v849
        %858 = vst.msk [vmem:[%s413 + $0x38] sm:$0xff] %vm438, %v850
        %p859 = scmp.lt.s32.totalorder %s27, 1
        %s860 = scalar_select %p859, %s27, 1
        %p861 = scmp.lt.s32.totalorder %s28, 0
        %s862 = scalar_select %p861, %s28, 0
        %s863 = smul.addr %s860, 8
        %s864 = sadd.s32 %s862, %s863
        %s865 = smul.addr %s864, 8
        %s866 = scalar_lea.vmem %s6, %s865
        %s867 = sand.u32 %s228, 1
        %s868 = scalar_lea.sflag [#allocation4], %s867
        %s869 = sand.u32 %s228, 1
        %s870 = smul.addr %s869, 64
        %s871 = scalar_lea.vmem [#allocation3], %s870
        // Predicated region
        $region45: #{self_attention_forward.1} parent=43 // pred_check
          %p872 = pneg %p210
        $region46: #{self_attention_forward.1} parent=43 // pred_check_branch
          %874 = sbr.rel (%p872) target = $region48
        $region47: #{self_attention_forward.1} parent=43 // pred_region
          _
        $region48: #{self_attention_forward.1} parent=43 // pred_fallthru
          _
        // Predicated region
        $region49: #{self_attention_forward.1} parent=43 // pred_check
          %p875 = pneg %p238
        $region50: #{self_attention_forward.1} parent=43 // pred_check_branch
          %877 = sbr.rel (%p875) target = $region52
        $region51: #{self_attention_forward.1} parent=43 // pred_region
          %s878 = smul.u32 8, %s28
          %s880 = ssub.s32 1024, 1024
          %881 = vsyncadd %s868, %s880
          %s882 = smul.addr %s27, 8
          %s883 = sadd.s32 %s878, %s882
          %s884 = smul.addr %s883, 128
          %s885 = scalar_lea.hbm %s7, %s884
          %s886 = sshll.u32 %s871, 4
          %s887 = int_to_ptr.vmem [resolvable:$true] %s886
          %892 = dma.vmem_to_hbm [thread:$0]  %s887, 1024, %s885, %s868, 128, 128, 8
        $region52: #{self_attention_forward.1} parent=43 // pred_fallthru
          _
      $region44: #{self_attention_forward.1} parent=5 // pred_fallthru
        _
      %p893 = scmp.le.s32.totalorder 2, %s18
      // Predicated region
      $region53: #{self_attention_forward.1} parent=5 // pred_check
        %p894 = pneg %p893
      $region54: #{self_attention_forward.1} parent=5 // pred_check_branch
        %896 = sbr.rel (%p894) target = $region56
      $region55: #{self_attention_forward.1} parent=5 // pred_region
        %s897 = ssub.s32 %s18, 2
        // Predicated region
        $region57: #{self_attention_forward.1} parent=55 // pred_check
          %p898 = pneg %p216
        $region58: #{self_attention_forward.1} parent=55 // pred_check_branch
          %900 = sbr.rel (%p898) target = $region60
        $region59: #{self_attention_forward.1} parent=55 // pred_region
          %p901 = scmp.lt.s32.totalorder %s29, 1
          %s902 = scalar_select %p901, %s29, 1
          %p903 = scmp.lt.s32.totalorder %s30, 0
          %s904 = scalar_select %p903, %s30, 0
          %s905 = smul.addr %s902, 8
          %s906 = sadd.s32 %s904, %s905
          %s907 = smul.addr %s906, 8
          %s908 = scalar_lea.vmem %s6, %s907
        $region60: #{self_attention_forward.1} parent=55 // pred_fallthru
          _
        // Predicated region
        $region61: #{self_attention_forward.1} parent=55 // pred_check
          %p909 = pneg %p244
        $region62: #{self_attention_forward.1} parent=55 // pred_check_branch
          %911 = sbr.rel (%p909) target = $region64
        $region63: #{self_attention_forward.1} parent=55 // pred_region
          %s912 = sand.u32 %s229, 1
          %s913 = scalar_lea.sflag [#allocation4], %s912
          %s914 = sand.u32 %s229, 1
          %s915 = smul.addr %s914, 64
          %s916 = scalar_lea.vmem [#allocation3], %s915
          %917 = dma.done %s913, 1024
        $region64: #{self_attention_forward.1} parent=55 // pred_fallthru
          _
      $region56: #{self_attention_forward.1} parent=5 // pred_fallthru
        _
    $region6: #{self_attention_forward.1} parent=1 // loop_footer
      %s22 = sadd.s32 1, %s18
    $region7: #{self_attention_forward.1} parent=1 // loop_footer_branch
      %17 = sbr.rel target = $region3
    $region8: #{self_attention_forward.1} parent=1 // loop_exit
      _
    %918 = vsyncpa [#allocation4], 1
    %s919 = scalar_lea.sflag [#allocation4], 1
    %920 = vsyncpa %s919, 1

</llo_original>
